<compile_context>
chip_gen: v5e
topology: v5e:2x2
jax: 0.10.0
libtpu: 0.0.40
codegen_flags: <defaults>
</compile_context>

<pallas_src>
import functools

import jax
import jax.numpy as jnp
from jax.experimental import pallas as pl
from jax.experimental.pallas import tpu as pltpu


# --------------------------- hardware-aware sizing ------------------------- #
def _round_up(x, m):
    return (x + m - 1) // m * m


@functools.lru_cache(maxsize=None)
def _vmem_capacity_bytes():
    try:
        return int(pltpu.get_tpu_info().vmem_capacity_bytes)
    except Exception:
        return 64 * 1024 * 1024  # conservative (v7x-sized) fallback


def _vmem_limit_bytes():
    phys = _vmem_capacity_bytes()
    return min(phys * 3 // 4, 100 * 1024 * 1024)


def _choose_node_tiles(n_nodes, f_in_pad_max, f_out_pad_max):
    """Pick (n_pad, tm, tk) for the fused aggregation kernel from the VMEM budget.

    Footprint model (bytes): double-buffered bf16 A_hat and X tiles, the resident
    bf16 weight, a double-buffered (worst-case f32) output tile and the f32
    accumulator scratch.  The largest square tile that fits 80% of the scoped VMEM
    limit is used, then clamped to the padded node count.
    """
    budget = int(_vmem_limit_bytes() * 0.8)          # leave pipelining headroom
    n_pad0 = _round_up(max(n_nodes, 8), 128)

    def footprint(t):
        return (2 * 2 * t * t                         # A_hat tile, 2 bufs, bf16
                + 2 * 2 * t * f_in_pad_max            # X tile, 2 bufs, bf16
                + 2 * 2 * f_in_pad_max * f_out_pad_max  # resident W (bf16)
                + 2 * 4 * t * f_out_pad_max           # out tile, 2 bufs, f32 worst case
                + 4 * t * f_in_pad_max)               # f32 accumulator scratch

    cap = 128
    for cand in (2048, 1024, 512, 256, 128):          # multiples of 256 preferred (MXU)
        if footprint(cand) <= budget:
            cap = cand
            break
    # TODO(synk): if the resident W alone blows the budget (very wide features),
    # the epilogue weight matmul would need its own tiling; not needed at GCN widths.

    tk = min(cap, n_pad0)
    n_pad = _round_up(n_pad0, tk)
    tm = min(cap, n_pad)
    # Guarantee >= 2 blocks along the "parallel" i axis so both v7x TensorCores
    # get work even when the whole padded node dim fits one tile.
    if n_pad // tm < 2 and n_pad >= 16:
        tm = n_pad // 2                               # multiple of 64 -> sublane-legal
    return n_pad, tm, tk


# ----------------------------- Pallas kernel ------------------------------ #
def _gcn_layer_kernel(a_ref, x_ref, w_ref, b_ref, out_ref, acc_ref, *, apply_relu):
    """Fused GCN layer: out = act((A_hat @ X) @ W + b) with f32 accumulation.

    Grid = (i over output node-rows [parallel], k over node-cols [arbitrary]).
    acc_ref (tm, F_in_pad) accumulates A_hat @ X over k; the epilogue at k==last
    applies the resident weight, bias and activation, then casts + stores.
    """
    k = pl.program_id(1)

    @pl.when(k == 0)
    def _():
        acc_ref[...] = jnp.zeros_like(acc_ref)

    acc_ref[...] += jnp.dot(a_ref[...], x_ref[...],
                            preferred_element_type=jnp.float32)

    @pl.when(k == pl.num_programs(1) - 1)
    def _():
        agg = acc_ref[...].astype(jnp.bfloat16)       # MXU input; acc stays f32
        y = jnp.dot(agg, w_ref[...], preferred_element_type=jnp.float32)
        y = y + b_ref[...]
        if apply_relu:
            y = jnp.maximum(y, 0.0)
        out_ref[...] = y.astype(out_ref.dtype)


def _gcn_layer_pallas(a_hat, x, w, b, *, tm, tk, apply_relu, out_dtype):
    """One fused GCN layer as a single pallas_call.

    a_hat: (N_pad, N_pad) bf16   x: (N_pad, F_in_pad) bf16
    w:     (F_in_pad, F_out_pad) bf16 (fully VMEM-resident)
    b:     (1, F_out_pad) f32    (fully VMEM-resident)
    """
    n, n2 = a_hat.shape
    n3, f_in = x.shape
    f_in2, f_out = w.shape
    assert n == n2 == n3 and f_in == f_in2
    assert n % tm == 0 and n % tk == 0
    grid = (n // tm, n // tk)
    kernel = functools.partial(_gcn_layer_kernel, apply_relu=apply_relu)
    return pl.pallas_call(
        kernel,
        out_shape=jax.ShapeDtypeStruct((n, f_out), out_dtype),
        grid_spec=pltpu.PrefetchScalarGridSpec(
            num_scalar_prefetch=0,
            grid=grid,
            in_specs=[
                pl.BlockSpec((tm, tk), lambda i, k: (i, k)),      # A_hat tile
                pl.BlockSpec((tk, f_in), lambda i, k: (k, 0)),    # X tile
                pl.BlockSpec((f_in, f_out), lambda i, k: (0, 0)),  # resident W
                pl.BlockSpec((1, f_out), lambda i, k: (0, 0)),    # resident bias row
            ],
            out_specs=pl.BlockSpec((tm, f_out), lambda i, k: (i, 0)),
            scratch_shapes=[pltpu.VMEM((tm, f_in), jnp.float32)],
        ),
        compiler_params=pltpu.CompilerParams(
            dimension_semantics=("parallel", "arbitrary"),
            vmem_limit_bytes=_vmem_limit_bytes(),
        ),
    )(a_hat, x, w, b)


# ------------------------------ Plain-JAX glue ----------------------------- #
def normalized_adjacency(edge_index, num_nodes):
    """Dense D^{-1/2} (A + I) D^{-1/2} from a [2, E] edge_index (f32 throughout).

    Duplicate edges are summed (matches PyG's scatter-add aggregation); a weight-1
    self-loop is added only where one does not already exist (add_remaining_self_loops).
    """
    src, dst = edge_index[0], edge_index[1]
    a = jnp.zeros((num_nodes, num_nodes), dtype=jnp.float32)
    a = a.at[dst, src].add(1.0)                      # out[dst] aggregates x[src]
    diag = jnp.diagonal(a)
    a = a + jnp.diag(jnp.where(diag == 0.0, 1.0, 0.0))
    deg = jnp.sum(a, axis=1)
    d_inv_sqrt = jnp.where(deg > 0, jax.lax.rsqrt(deg), 0.0)
    return d_inv_sqrt[:, None] * a * d_inv_sqrt[None, :]


def init_gcn_params(key, input_dim, hidden_dim, output_dim, num_layers):
    """Deterministic Glorot-uniform weights + zero biases for all GCNConv layers."""
    dims = [(input_dim, hidden_dim)] + [(hidden_dim, hidden_dim)] * (num_layers - 1)
    dims.append((hidden_dim, output_dim))            # final_conv
    params = []
    for (fin, fout) in dims:
        key, sub = jax.random.split(key)
        limit = jnp.sqrt(6.0 / (fin + fout))
        w = jax.random.uniform(sub, (fin, fout), jnp.float32, -limit, limit)
        b = jnp.zeros((fout,), jnp.float32)
        params.append((w, b))
    return params


def gcn_forward(x, edge_index, params):
    """Full GCN forward: hidden layers (relu; dropout=identity at eval) + final conv."""
    n_nodes, input_dim = x.shape
    output_dim = params[-1][0].shape[1]

    # A_hat is built/normalized in f32 for accuracy, then cast to bf16 for the MXU.
    a_hat = normalized_adjacency(edge_index, n_nodes)

    # Feature dims are kept fully resident (untiled) per layer; pad to lane multiple.
    f_in_pads = [_round_up(input_dim, 128)] + [_round_up(w.shape[1], 128)
                                               for (w, _) in params[:-1]]
    f_out_pads = [_round_up(w.shape[1], 128) for (w, _) in params]

    n_pad, t_m, t_k = _choose_node_tiles(n_nodes, max(f_in_pads), max(f_out_pads))

    a_bf = jnp.pad(a_hat, ((0, n_pad - n_nodes),
                           (0, n_pad - n_nodes))).astype(jnp.bfloat16)

    f_cur, f_cur_pad = input_dim, f_in_pads[0]
    h = jnp.pad(x, ((0, n_pad - n_nodes),
                    (0, f_cur_pad - input_dim))).astype(jnp.bfloat16)

    n_layers = len(params)
    for idx, (w, b) in enumerate(params):
        is_last = idx == n_layers - 1
        f_out = w.shape[1]
        f_out_pad = f_out_pads[idx]

        w_p = jnp.pad(w, ((0, f_cur_pad - f_cur),
                          (0, f_out_pad - f_out))).astype(jnp.bfloat16)
        b_p = jnp.pad(b, (0, f_out_pad - f_out)).reshape(1, f_out_pad).astype(jnp.float32)
        out_dtype = jnp.float32 if is_last else jnp.bfloat16
        apply_relu = not is_last  # hidden layers: relu (dropout = identity at inference)

        # One fused kernel per layer: A_hat streamed from HBM exactly once,
        # weight matmul + bias + relu fused into the accumulator epilogue.
        # TODO(synk): when F_in >> F_out, hoisting X@W ahead of the aggregation
        # would shrink the streamed X width; negligible vs the N^2 A_hat stream.
        h = _gcn_layer_pallas(a_bf, h, w_p, b_p, tm=t_m, tk=t_k,
                              apply_relu=apply_relu, out_dtype=out_dtype)

        f_cur, f_cur_pad = f_out, f_out_pad

    return h[:n_nodes, :output_dim]


# ---------------------------------- main ----------------------------------- #
if __name__ == "__main__":
    key = jax.random.PRNGKey(0)

    num_nodes = 16
    input_dim, hidden_dim, output_dim = 8, 32, 4
    num_layers = 2
    num_edges = 40

    k_x, k_e, k_p = jax.random.split(key, 3)
    x = jax.random.normal(k_x, (num_nodes, input_dim), dtype=jnp.float32)
    # random directed edges; made symmetric so the GCN normalization is well-posed
    e = jax.random.randint(k_e, (2, num_edges), 0, num_nodes, dtype=jnp.int32)
    edge_index = jnp.concatenate([e, e[::-1]], axis=1)   # [2, 2E]

    params = init_gcn_params(k_p, input_dim, hidden_dim, output_dim, num_layers)

    gcn = jax.jit(gcn_forward)
    out = gcn(x, edge_index, params)
    jax.block_until_ready(out)
    assert out.shape == (num_nodes, output_dim)
    print("KERNEL_OK")
</pallas_src>

<mosaic_0001>
module attributes {stable_mosaic.version = 11 : i64} {
  func.func @_gcn_layer_kernel(%arg0: i32, %arg1: i32, %arg2: memref<64x128xbf16, #tpu.memory_space<vmem>>, %arg3: memref<128x128xbf16, #tpu.memory_space<vmem>>, %arg4: memref<128x128xbf16, #tpu.memory_space<vmem>>, %arg5: memref<1x128xf32, #tpu.memory_space<vmem>>, %arg6: memref<64x128xbf16, #tpu.memory_space<vmem>>, %arg7: memref<64x128xf32, #tpu.memory_space<vmem>>) attributes {dimension_semantics = [#tpu.dimension_semantics<parallel>, #tpu.dimension_semantics<arbitrary>], iteration_bounds = array<i64: 2, 1>, scalar_prefetch = 0 : i64, scratch_operands = 1 : i64, tpu.core_type = #tpu.core_type<tc>, window_params = [{transform_indices = @transform_0, window_bounds = array<i64: 64, 128>}, {transform_indices = @transform_1, window_bounds = array<i64: 128, 128>}, {pipeline_mode = #tpu.pipeline_mode<synchronous>, transform_indices = @transform_2, window_bounds = array<i64: 128, 128>}, {pipeline_mode = #tpu.pipeline_mode<synchronous>, transform_indices = @transform_3, window_bounds = array<i64: 1, 128>}, {transform_indices = @transform_4, window_bounds = array<i64: 64, 128>}]} {
    %c0_i32 = arith.constant 0 : i32
    %0 = arith.cmpi eq, %arg1, %c0_i32 : i32
    %1 = arith.extui %0 : i1 to i32
    %c0_i32_0 = arith.constant 0 : i32
    %2 = arith.cmpi ne, %1, %c0_i32_0 : i32
    scf.if %2 {
      %cst_10 = arith.constant 0.000000e+00 : f32
      %12 = vector.broadcast %cst_10 : f32 to vector<64x128xf32>
      %c0_11 = arith.constant 0 : index
      %c0_12 = arith.constant 0 : index
      %13 = vector.load %arg7[%c0_11, %c0_12] : memref<64x128xf32, #tpu.memory_space<vmem>>, vector<64x128xf32>
      tpu.vector_store %arg7[%c0_11, %c0_12], %12 {strides = array<i32>} : memref<64x128xf32, #tpu.memory_space<vmem>>, vector<64x128xf32>,
    } else {
    }
    %c0 = arith.constant 0 : index
    %c0_1 = arith.constant 0 : index
    %3 = vector.load %arg7[%c0, %c0_1] : memref<64x128xf32, #tpu.memory_space<vmem>>, vector<64x128xf32>
    %c0_2 = arith.constant 0 : index
    %c0_3 = arith.constant 0 : index
    %4 = vector.load %arg2[%c0_2, %c0_3] : memref<64x128xbf16, #tpu.memory_space<vmem>>, vector<64x128xbf16>
    %c0_4 = arith.constant 0 : index
    %c0_5 = arith.constant 0 : index
    %5 = vector.load %arg3[%c0_4, %c0_5] : memref<128x128xbf16, #tpu.memory_space<vmem>>, vector<128x128xbf16>
    %cst = arith.constant dense<0.000000e+00> : vector<64x128xf32>
    %6 = tpu.matmul %4, %5, %cst {dimension_numbers = #tpu.dot_dimension_numbers<[1], [0], [0], [1], [0, 0, 1, 1], [], []>} : vector<64x128xbf16>, vector<128x128xbf16>, vector<64x128xf32> -> vector<64x128xf32>
    %7 = arith.addf %3, %6 : vector<64x128xf32>
    %c0_6 = arith.constant 0 : index
    %c0_7 = arith.constant 0 : index
    %8 = vector.load %arg7[%c0_6, %c0_7] : memref<64x128xf32, #tpu.memory_space<vmem>>, vector<64x128xf32>
    tpu.vector_store %arg7[%c0_6, %c0_7], %7 {strides = array<i32>} : memref<64x128xf32, #tpu.memory_space<vmem>>, vector<64x128xf32>,
    %c0_i32_8 = arith.constant 0 : i32
    %9 = arith.cmpi eq, %arg1, %c0_i32_8 : i32
    %10 = arith.extui %9 : i1 to i32
    %c0_i32_9 = arith.constant 0 : i32
    %11 = arith.cmpi ne, %10, %c0_i32_9 : i32
    scf.if %11 {
      %c0_10 = arith.constant 0 : index
      %c0_11 = arith.constant 0 : index
      %12 = vector.load %arg7[%c0_10, %c0_11] : memref<64x128xf32, #tpu.memory_space<vmem>>, vector<64x128xf32>
      %13 = arith.truncf %12 : vector<64x128xf32> to vector<64x128xbf16>
      %c0_12 = arith.constant 0 : index
      %c0_13 = arith.constant 0 : index
      %14 = vector.load %arg4[%c0_12, %c0_13] : memref<128x128xbf16, #tpu.memory_space<vmem>>, vector<128x128xbf16>
      %cst_14 = arith.constant dense<0.000000e+00> : vector<64x128xf32>
      %15 = tpu.matmul %13, %14, %cst_14 {dimension_numbers = #tpu.dot_dimension_numbers<[1], [0], [0], [1], [0, 0, 1, 1], [], []>} : vector<64x128xbf16>, vector<128x128xbf16>, vector<64x128xf32> -> vector<64x128xf32>
      %c0_15 = arith.constant 0 : index
      %c0_16 = arith.constant 0 : index
      %16 = vector.load %arg5[%c0_15, %c0_16] : memref<1x128xf32, #tpu.memory_space<vmem>>, vector<1x128xf32>
      %17 = vector.broadcast %16 : vector<1x128xf32> to vector<64x128xf32>
      %18 = arith.addf %15, %17 : vector<64x128xf32>
      %cst_17 = arith.constant 0.000000e+00 : f32
      %19 = vector.broadcast %cst_17 : f32 to vector<64x128xf32>
      %20 = arith.maximumf %18, %19 : vector<64x128xf32>
      %21 = arith.truncf %20 : vector<64x128xf32> to vector<64x128xbf16>
      %c0_18 = arith.constant 0 : index
      %c0_19 = arith.constant 0 : index
      %22 = vector.load %arg6[%c0_18, %c0_19] : memref<64x128xbf16, #tpu.memory_space<vmem>>, vector<64x128xbf16>
      tpu.vector_store %arg6[%c0_18, %c0_19], %21 {strides = array<i32>} : memref<64x128xbf16, #tpu.memory_space<vmem>>, vector<64x128xbf16>,
    } else {
    }
    return
  }
  func.func @transform_0(%arg0: i32, %arg1: i32) -> (i32, i32) {
    %c0_i32 = arith.constant 0 : i32
    return %arg0, %arg1 : i32, i32
  }
  func.func @transform_1(%arg0: i32, %arg1: i32) -> (i32, i32) {
    %c0_i32 = arith.constant 0 : i32
    %c0_i32_0 = arith.constant 0 : i32
    return %arg1, %c0_i32 : i32, i32
  }
  func.func @transform_2(%arg0: i32, %arg1: i32) -> (i32, i32) {
    %c0_i32 = arith.constant 0 : i32
    %c0_i32_0 = arith.constant 0 : i32
    %c0_i32_1 = arith.constant 0 : i32
    return %c0_i32, %c0_i32_0 : i32, i32
  }
  func.func @transform_3(%arg0: i32, %arg1: i32) -> (i32, i32) {
    %c0_i32 = arith.constant 0 : i32
    %c0_i32_0 = arith.constant 0 : i32
    %c0_i32_1 = arith.constant 0 : i32
    return %c0_i32, %c0_i32_0 : i32, i32
  }
  func.func @transform_4(%arg0: i32, %arg1: i32) -> (i32, i32) {
    %c0_i32 = arith.constant 0 : i32
    %c0_i32_0 = arith.constant 0 : i32
    return %arg0, %c0_i32 : i32, i32
  }
}

module attributes {stable_mosaic.version = 11 : i64} {
  func.func @_gcn_layer_kernel(%arg0: i32, %arg1: i32, %arg2: memref<64x128xbf16, #tpu.memory_space<vmem>>, %arg3: memref<128x128xbf16, #tpu.memory_space<vmem>>, %arg4: memref<128x128xbf16, #tpu.memory_space<vmem>>, %arg5: memref<1x128xf32, #tpu.memory_space<vmem>>, %arg6: memref<64x128xf32, #tpu.memory_space<vmem>>, %arg7: memref<64x128xf32, #tpu.memory_space<vmem>>) attributes {dimension_semantics = [#tpu.dimension_semantics<parallel>, #tpu.dimension_semantics<arbitrary>], iteration_bounds = array<i64: 2, 1>, scalar_prefetch = 0 : i64, scratch_operands = 1 : i64, tpu.core_type = #tpu.core_type<tc>, window_params = [{transform_indices = @transform_0, window_bounds = array<i64: 64, 128>}, {transform_indices = @transform_1, window_bounds = array<i64: 128, 128>}, {pipeline_mode = #tpu.pipeline_mode<synchronous>, transform_indices = @transform_2, window_bounds = array<i64: 128, 128>}, {pipeline_mode = #tpu.pipeline_mode<synchronous>, transform_indices = @transform_3, window_bounds = array<i64: 1, 128>}, {transform_indices = @transform_4, window_bounds = array<i64: 64, 128>}]} {
    %c0_i32 = arith.constant 0 : i32
    %0 = arith.cmpi eq, %arg1, %c0_i32 : i32
    %1 = arith.extui %0 : i1 to i32
    %c0_i32_0 = arith.constant 0 : i32
    %2 = arith.cmpi ne, %1, %c0_i32_0 : i32
    scf.if %2 {
      %cst_10 = arith.constant 0.000000e+00 : f32
      %12 = vector.broadcast %cst_10 : f32 to vector<64x128xf32>
      %c0_11 = arith.constant 0 : index
      %c0_12 = arith.constant 0 : index
      %13 = vector.load %arg7[%c0_11, %c0_12] : memref<64x128xf32, #tpu.memory_space<vmem>>, vector<64x128xf32>
      tpu.vector_store %arg7[%c0_11, %c0_12], %12 {strides = array<i32>} : memref<64x128xf32, #tpu.memory_space<vmem>>, vector<64x128xf32>,
    } else {
    }
    %c0 = arith.constant 0 : index
    %c0_1 = arith.constant 0 : index
    %3 = vector.load %arg7[%c0, %c0_1] : memref<64x128xf32, #tpu.memory_space<vmem>>, vector<64x128xf32>
    %c0_2 = arith.constant 0 : index
    %c0_3 = arith.constant 0 : index
    %4 = vector.load %arg2[%c0_2, %c0_3] : memref<64x128xbf16, #tpu.memory_space<vmem>>, vector<64x128xbf16>
    %c0_4 = arith.constant 0 : index
    %c0_5 = arith.constant 0 : index
    %5 = vector.load %arg3[%c0_4, %c0_5] : memref<128x128xbf16, #tpu.memory_space<vmem>>, vector<128x128xbf16>
    %cst = arith.constant dense<0.000000e+00> : vector<64x128xf32>
    %6 = tpu.matmul %4, %5, %cst {dimension_numbers = #tpu.dot_dimension_numbers<[1], [0], [0], [1], [0, 0, 1, 1], [], []>} : vector<64x128xbf16>, vector<128x128xbf16>, vector<64x128xf32> -> vector<64x128xf32>
    %7 = arith.addf %3, %6 : vector<64x128xf32>
    %c0_6 = arith.constant 0 : index
    %c0_7 = arith.constant 0 : index
    %8 = vector.load %arg7[%c0_6, %c0_7] : memref<64x128xf32, #tpu.memory_space<vmem>>, vector<64x128xf32>
    tpu.vector_store %arg7[%c0_6, %c0_7], %7 {strides = array<i32>} : memref<64x128xf32, #tpu.memory_space<vmem>>, vector<64x128xf32>,
    %c0_i32_8 = arith.constant 0 : i32
    %9 = arith.cmpi eq, %arg1, %c0_i32_8 : i32
    %10 = arith.extui %9 : i1 to i32
    %c0_i32_9 = arith.constant 0 : i32
    %11 = arith.cmpi ne, %10, %c0_i32_9 : i32
    scf.if %11 {
      %c0_10 = arith.constant 0 : index
      %c0_11 = arith.constant 0 : index
      %12 = vector.load %arg7[%c0_10, %c0_11] : memref<64x128xf32, #tpu.memory_space<vmem>>, vector<64x128xf32>
      %13 = arith.truncf %12 : vector<64x128xf32> to vector<64x128xbf16>
      %c0_12 = arith.constant 0 : index
      %c0_13 = arith.constant 0 : index
      %14 = vector.load %arg4[%c0_12, %c0_13] : memref<128x128xbf16, #tpu.memory_space<vmem>>, vector<128x128xbf16>
      %cst_14 = arith.constant dense<0.000000e+00> : vector<64x128xf32>
      %15 = tpu.matmul %13, %14, %cst_14 {dimension_numbers = #tpu.dot_dimension_numbers<[1], [0], [0], [1], [0, 0, 1, 1], [], []>} : vector<64x128xbf16>, vector<128x128xbf16>, vector<64x128xf32> -> vector<64x128xf32>
      %c0_15 = arith.constant 0 : index
      %c0_16 = arith.constant 0 : index
      %16 = vector.load %arg5[%c0_15, %c0_16] : memref<1x128xf32, #tpu.memory_space<vmem>>, vector<1x128xf32>
      %17 = vector.broadcast %16 : vector<1x128xf32> to vector<64x128xf32>
      %18 = arith.addf %15, %17 : vector<64x128xf32>
      %c0_17 = arith.constant 0 : index
      %c0_18 = arith.constant 0 : index
      %19 = vector.load %arg6[%c0_17, %c0_18] : memref<64x128xf32, #tpu.memory_space<vmem>>, vector<64x128xf32>
      tpu.vector_store %arg6[%c0_17, %c0_18], %18 {strides = array<i32>} : memref<64x128xf32, #tpu.memory_space<vmem>>, vector<64x128xf32>,
    } else {
    }
    return
  }
  func.func @transform_0(%arg0: i32, %arg1: i32) -> (i32, i32) {
    %c0_i32 = arith.constant 0 : i32
    return %arg0, %arg1 : i32, i32
  }
  func.func @transform_1(%arg0: i32, %arg1: i32) -> (i32, i32) {
    %c0_i32 = arith.constant 0 : i32
    %c0_i32_0 = arith.constant 0 : i32
    return %arg1, %c0_i32 : i32, i32
  }
  func.func @transform_2(%arg0: i32, %arg1: i32) -> (i32, i32) {
    %c0_i32 = arith.constant 0 : i32
    %c0_i32_0 = arith.constant 0 : i32
    %c0_i32_1 = arith.constant 0 : i32
    return %c0_i32, %c0_i32_0 : i32, i32
  }
  func.func @transform_3(%arg0: i32, %arg1: i32) -> (i32, i32) {
    %c0_i32 = arith.constant 0 : i32
    %c0_i32_0 = arith.constant 0 : i32
    %c0_i32_1 = arith.constant 0 : i32
    return %c0_i32, %c0_i32_0 : i32, i32
  }
  func.func @transform_4(%arg0: i32, %arg1: i32) -> (i32, i32) {
    %c0_i32 = arith.constant 0 : i32
    %c0_i32_0 = arith.constant 0 : i32
    return %arg0, %c0_i32 : i32, i32
  }
}

</mosaic_0001>

<llo_original>
// kernel: gcn_forward.5
$region0: #{gcn_forward.5}
  #allocation0 [shape = 'u32[]', space=smem, size = 0x4, offset = 0x4, fixed_abs, tag = 'smem constant byte address 0x4 - core index']
  #allocation1 [shape = 'u32[72,128]{1,0:T(1,128)}', space=vmem, size = 0x9000, scoped, tag = 'internal scratch']
  #allocation2 [shape = 'f32[64,128]{1,0:T(8,128)}', space=vmem, size = 0x8000, scoped, tag = 'scratch operand']
  %s0 = inlined_call_operand.vmem [shape: bf16[128,128], index: 0, kind: input, shape index: {}]
  %s1 = inlined_call_operand.vmem [shape: bf16[128,128], index: 1, kind: input, shape index: {}]
  %s2 = inlined_call_operand.vmem [shape: bf16[128,128], index: 2, kind: input, shape index: {}]
  %s3 = inlined_call_operand.vmem [shape: f32[1,128], index: 3, kind: input, shape index: {}]
  %s4 = inlined_call_operand.vmem [shape: f32[128,128], index: 4, kind: output, shape index: {}]
  %s5 = sld [smem:[#allocation0]]
  $region57: #{gcn_forward.5} parent=0
    _
  %s7 = ssub.s32 1, %s5
  %s8 = scalar_select 0, %s7, %s5
  loop: start=0, step=1, limit=4
  $region2: #{gcn_forward.5} parent=0 // loop_pre_header
    _
  $region3: #{gcn_forward.5} parent=0 // loop_header
    %s10 = sphi 0, %s14
    %p11 = scmp.ge.s32.totalorder %s10, 4
    %s17 = sphi 0, %s29
    %s18 = sphi 0, %s25
    %s19 = sphi 0, %s17
    %s20 = sphi 0, %s18
    %s21 = sphi 0, %s19
    %s22 = sphi 0, %s20
    %s34 = sphi 0, %s36
    %s37 = sphi 0, %s34
    %s38 = sphi 0, %s37
    %s54 = sphi 0, %s38
    %s60 = sphi 0, %s62
    %s63 = sphi 0, %s60
    %s64 = sphi 0, %s63
    %s80 = sphi 0, %s64
    %s84 = sphi 0, %s84
    %s86 = sphi 0, %s84
    %s87 = sphi 0, %s86
    %s101 = sphi 0, %s87
    %s105 = sphi 0, %s105
    %s107 = sphi 0, %s105
    %s108 = sphi 0, %s107
    %s122 = sphi 0, %s108
    %s128 = sphi 0, %s130
    %s131 = sphi 0, %s128
    %s132 = sphi 0, %s131
    %s148 = sphi 0, %s132
  $region4: #{gcn_forward.5} parent=0 // loop_header_branch
    %13 = sbr.rel (%p11) target = $region8
  $region5: #{gcn_forward.5} parent=0 // loop_body
    %s15 = ssub.s32 %s10, 1
    %s16 = ssub.s32 %s10, 2
    %s23 = sadd.s32 1, %s18
    %p24 = scmp.ge.s32.totalorder %s23, 1
    %s25 = scalar_select %p24, 0, %s23
    %s26 = sadd.s32 1, %s17
    %s27 = scalar_select %p24, %s26, %s17
    %p28 = scmp.ge.s32.totalorder %s27, 2
    %s29 = scalar_select %p28, 0, %s27
    %s30 = ssub.s32 %s17, %s29
    %s31 = ssub.s32 %s18, %s25
    %s32 = sor.u32 %s30, %s31
    %p33 = scmp.eq.s32.totalorder %s32, 0
    %s35 = sadd.s32 %s34, 1
    %s36 = scalar_select %p33, %s34, %s35
    %p39 = pneg %p33
    %p40 = scmp.eq.s32.totalorder %s10, 1
    %p41 = por %p39, %p40
    %p42 = scmp.ne.s32.totalorder %s34, %s37
    %p43 = scmp.eq.s32.totalorder %s10, 0
    %p44 = por %p42, %p43
    %p45 = scmp.ne.s32.totalorder %s34, %s37
    %p46 = scmp.eq.s32.totalorder %s15, 1
    %p47 = por %p45, %p46
    %p48 = scmp.ne.s32.totalorder %s37, %s38
    %p49 = scmp.eq.s32.totalorder %s15, 0
    %p50 = por %p48, %p49
    %p51 = scmp.ne.s32.totalorder %s37, %s38
    %p52 = scmp.eq.s32.totalorder %s16, 1
    %p53 = por %p51, %p52
    %p55 = scmp.ne.s32.totalorder %s38, %s54
    %p56 = scmp.eq.s32.totalorder %s16, 0
    %p57 = por %p55, %p56
    %s58 = ssub.s32 %s18, %s25
    %p59 = scmp.eq.s32.totalorder %s58, 0
    %s61 = sadd.s32 %s60, 1
    %s62 = scalar_select %p59, %s60, %s61
    %p65 = pneg %p59
    %p66 = scmp.eq.s32.totalorder %s10, 1
    %p67 = por %p65, %p66
    %p68 = scmp.ne.s32.totalorder %s60, %s63
    %p69 = scmp.eq.s32.totalorder %s10, 0
    %p70 = por %p68, %p69
    %p71 = scmp.ne.s32.totalorder %s60, %s63
    %p72 = scmp.eq.s32.totalorder %s15, 1
    %p73 = por %p71, %p72
    %p74 = scmp.ne.s32.totalorder %s63, %s64
    %p75 = scmp.eq.s32.totalorder %s15, 0
    %p76 = por %p74, %p75
    %p77 = scmp.ne.s32.totalorder %s63, %s64
    %p78 = scmp.eq.s32.totalorder %s16, 1
    %p79 = por %p77, %p78
    %p81 = scmp.ne.s32.totalorder %s64, %s80
    %p82 = scmp.eq.s32.totalorder %s16, 0
    %p83 = por %p81, %p82
    %s85 = sadd.s32 %s84, 1
    %p88 = scmp.eq.s32.totalorder %s10, 1
    %p89 = scmp.ne.s32.totalorder %s84, %s86
    %p90 = scmp.eq.s32.totalorder %s10, 0
    %p91 = por %p89, %p90
    %p92 = scmp.ne.s32.totalorder %s84, %s86
    %p93 = scmp.eq.s32.totalorder %s15, 1
    %p94 = por %p92, %p93
    %p95 = scmp.ne.s32.totalorder %s86, %s87
    %p96 = scmp.eq.s32.totalorder %s15, 0
    %p97 = por %p95, %p96
    %p98 = scmp.ne.s32.totalorder %s86, %s87
    %p99 = scmp.eq.s32.totalorder %s16, 1
    %p100 = por %p98, %p99
    %p102 = scmp.ne.s32.totalorder %s87, %s101
    %p103 = scmp.eq.s32.totalorder %s16, 0
    %p104 = por %p102, %p103
    %s106 = sadd.s32 %s105, 1
    %p109 = scmp.eq.s32.totalorder %s10, 1
    %p110 = scmp.ne.s32.totalorder %s105, %s107
    %p111 = scmp.eq.s32.totalorder %s10, 0
    %p112 = por %p110, %p111
    %p113 = scmp.ne.s32.totalorder %s105, %s107
    %p114 = scmp.eq.s32.totalorder %s15, 1
    %p115 = por %p113, %p114
    %p116 = scmp.ne.s32.totalorder %s107, %s108
    %p117 = scmp.eq.s32.totalorder %s15, 0
    %p118 = por %p116, %p117
    %p119 = scmp.ne.s32.totalorder %s107, %s108
    %p120 = scmp.eq.s32.totalorder %s16, 1
    %p121 = por %p119, %p120
    %p123 = scmp.ne.s32.totalorder %s108, %s122
    %p124 = scmp.eq.s32.totalorder %s16, 0
    %p125 = por %p123, %p124
    %s126 = ssub.s32 %s17, %s29
    %p127 = scmp.eq.s32.totalorder %s126, 0
    %s129 = sadd.s32 %s128, 1
    %s130 = scalar_select %p127, %s128, %s129
    %p133 = pneg %p127
    %p134 = scmp.eq.s32.totalorder %s10, 1
    %p135 = por %p133, %p134
    %p136 = scmp.ne.s32.totalorder %s128, %s131
    %p137 = scmp.eq.s32.totalorder %s10, 0
    %p138 = por %p136, %p137
    %p139 = scmp.ne.s32.totalorder %s128, %s131
    %p140 = scmp.eq.s32.totalorder %s15, 1
    %p141 = por %p139, %p140
    %p142 = scmp.ne.s32.totalorder %s131, %s132
    %p143 = scmp.eq.s32.totalorder %s15, 0
    %p144 = por %p142, %p143
    %p145 = scmp.ne.s32.totalorder %s131, %s132
    %p146 = scmp.eq.s32.totalorder %s16, 1
    %p147 = por %p145, %p146
    %p149 = scmp.ne.s32.totalorder %s132, %s148
    %p150 = scmp.eq.s32.totalorder %s16, 0
    %p151 = por %p149, %p150
    %p152 = scmp.le.s32.totalorder 1, %s10
    %p153 = scmp.lt.s32.totalorder %s10, 3
    %p154 = pnand %p152, %p153
    %p155 = pneg %p154
    // Predicated region
    $region9: #{gcn_forward.5} parent=5 // pred_check
      _
    $region10: #{gcn_forward.5} parent=5 // pred_check_branch
      %157 = sbr.rel (%p154) target = $region12
    $region11: #{gcn_forward.5} parent=5 // pred_region
      %s158 = ssub.s32 %s10, 1
      // Predicated region
      $region13: #{gcn_forward.5} parent=11 // pred_check
        %p159 = pneg %p76
      $region14: #{gcn_forward.5} parent=11 // pred_check_branch
        %161 = sbr.rel (%p159) target = $region16
      $region15: #{gcn_forward.5} parent=11 // pred_region
        %s162 = smul.u32 16, %s20
        %p163 = scmp.lt.s32.totalorder %s162, 15
        %s164 = scalar_select %p163, %s162, 15
        %s165 = smul.addr %s164, 4
        %s166 = scalar_lea.vmem %s1, %s165
        %s167 = smul.u32 16, %s20
      $region16: #{gcn_forward.5} parent=11 // pred_fallthru
        _
      // Predicated region
      $region17: #{gcn_forward.5} parent=11 // pred_check
        %p168 = pneg %p97
      $region18: #{gcn_forward.5} parent=11 // pred_check_branch
        %170 = sbr.rel (%p168) target = $region20
      $region19: #{gcn_forward.5} parent=11 // pred_region
        _
      $region20: #{gcn_forward.5} parent=11 // pred_fallthru
        _
      // Predicated region
      $region21: #{gcn_forward.5} parent=11 // pred_check
        %p171 = pneg %p118
      $region22: #{gcn_forward.5} parent=11 // pred_check_branch
        %173 = sbr.rel (%p171) target = $region24
      $region23: #{gcn_forward.5} parent=11 // pred_region
        _
      $region24: #{gcn_forward.5} parent=11 // pred_fallthru
        _
    $region12: #{gcn_forward.5} parent=5 // pred_fallthru
      _
    %p174 = scmp.lt.s32.totalorder %s10, 2
    // Predicated region
    $region25: #{gcn_forward.5} parent=5 // pred_check
      %p175 = pneg %p174
    $region26: #{gcn_forward.5} parent=5 // pred_check_branch
      %177 = sbr.rel (%p175) target = $region28
    $region27: #{gcn_forward.5} parent=5 // pred_region
      // Predicated region
      $region29: #{gcn_forward.5} parent=27 // pred_check
        %p178 = pneg %p44
      $region30: #{gcn_forward.5} parent=27 // pred_check_branch
        %180 = sbr.rel (%p178) target = $region32
      $region31: #{gcn_forward.5} parent=27 // pred_region
        %s181 = smul.u32 8, %s17
        %p182 = scmp.lt.s32.totalorder %s181, 15
        %s183 = scalar_select %p182, %s181, 15
        %p184 = scmp.lt.s32.totalorder %s18, 0
        %s185 = scalar_select %p184, %s18, 0
        %s186 = sadd.s32 %s185, %s183
        %s187 = smul.addr %s186, 4
        %s188 = scalar_lea.vmem %s0, %s187
        %s189 = smul.u32 8, %s17
      $region32: #{gcn_forward.5} parent=27 // pred_fallthru
        _
    $region28: #{gcn_forward.5} parent=5 // pred_fallthru
      _
    %p190 = scmp.le.s32.totalorder 1, %s10
    %p191 = scmp.lt.s32.totalorder %s10, 3
    %p192 = pnand %p190, %p191
    %p193 = pneg %p192
    // Predicated region
    $region33: #{gcn_forward.5} parent=5 // pred_check
      _
    $region34: #{gcn_forward.5} parent=5 // pred_check_branch
      %195 = sbr.rel (%p192) target = $region36
    $region35: #{gcn_forward.5} parent=5 // pred_region
      %s196 = ssub.s32 %s10, 1
      %s197 = smul.u32 8, %s19
      %p198 = scmp.lt.s32.totalorder %s197, 15
      %s199 = scalar_select %p198, %s197, 15
      %p200 = scmp.lt.s32.totalorder %s20, 0
      %s201 = scalar_select %p200, %s20, 0
      %s202 = sadd.s32 %s201, %s199
      %s203 = smul.addr %s202, 4
      %s204 = scalar_lea.vmem %s0, %s203
      %p205 = pneg %p50
      %p206 = pneg %p47
      %s207 = smul.u32 16, %s20
      %p208 = scmp.lt.s32.totalorder %s207, 15
      %s209 = scalar_select %p208, %s207, 15
      %s210 = smul.addr %s209, 4
      %s211 = scalar_lea.vmem %s1, %s210
      %p212 = pneg %p76
      %p213 = pneg %p73
      %p214 = pneg %p97
      %p215 = pneg %p94
      %p216 = pneg %p118
      %p217 = pneg %p115
      %p218 = pneg %p144
      %p219 = pneg %p141
      %s220 = smul.u32 8, %s19
      %p221 = scmp.lt.s32.totalorder %s220, 15
      %s222 = scalar_select %p221, %s220, 15
      %s223 = smul.addr %s222, 8
      %s224 = scalar_lea.vmem %s4, %s223
      %s225 = smul.u32 8, %s19
      %p226 = scmp.lt.s32.totalorder %s225, 15
      %s227 = scalar_select %p226, %s225, 15
      %p228 = scmp.lt.s32.totalorder %s20, 0
      %s229 = scalar_select %p228, %s20, 0
      %s230 = sadd.s32 %s229, %s227
      %s231 = smul.addr %s230, 4
      %s232 = scalar_lea.vmem %s0, %s231
      %s233 = smul.u32 8, %s19
      %s234 = smul.u32 16, %s20
      %p235 = scmp.lt.s32.totalorder %s234, 15
      %s236 = scalar_select %p235, %s234, 15
      %s237 = smul.addr %s236, 4
      %s238 = scalar_lea.vmem %s1, %s237
      %s239 = smul.u32 16, %s20
      %s240 = smul.u32 8, %s19
      %p241 = scmp.lt.s32.totalorder %s240, 15
      %s242 = scalar_select %p241, %s240, 15
      %s243 = smul.addr %s242, 8
      %s244 = scalar_lea.vmem %s4, %s243
      %s245 = smul.u32 8, %s19
      %p246 = scmp.eq.s32.totalorder %s20, 0
      // Predicated region
      $region37: #{gcn_forward.5} parent=35 // pred_check
        %p247 = pneg %p246
      $region38: #{gcn_forward.5} parent=35 // pred_check_branch
        %249 = sbr.rel (%p247) target = $region40
      $region39: #{gcn_forward.5} parent=35 // pred_region
        %250 = vst [vmem:[#allocation2] sm:$0xff] 0.0
        %251 = vst [vmem:[#allocation2 + $0x8] sm:$0xff] 0.0
        %252 = vst [vmem:[#allocation2 + $0x10] sm:$0xff] 0.0
        %253 = vst [vmem:[#allocation2 + $0x18] sm:$0xff] 0.0
        %254 = vst [vmem:[#allocation2 + $0x20] sm:$0xff] 0.0
        %255 = vst [vmem:[#allocation2 + $0x28] sm:$0xff] 0.0
        %256 = vst [vmem:[#allocation2 + $0x30] sm:$0xff] 0.0
        %257 = vst [vmem:[#allocation2 + $0x38] sm:$0xff] 0.0
      $region40: #{gcn_forward.5} parent=35 // pred_fallthru
        _
      %v258 = vld [vmem:[#allocation2] sm:$0xff]
      %v259 = vld [vmem:[#allocation2 + $0x8] sm:$0xff]
      %v260 = vld [vmem:[#allocation2 + $0x10] sm:$0xff]
      %v261 = vld [vmem:[#allocation2 + $0x18] sm:$0xff]
      %v262 = vld [vmem:[#allocation2 + $0x20] sm:$0xff]
      %v263 = vld [vmem:[#allocation2 + $0x28] sm:$0xff]
      %v264 = vld [vmem:[#allocation2 + $0x30] sm:$0xff]
      %v265 = vld [vmem:[#allocation2 + $0x38] sm:$0xff]
      %v266 = vld [vmem:[%s232] sm:$0xf]
      %v267 = vld [vmem:[%s232 + $0x4] sm:$0xf]
      %v268 = vld [vmem:[%s232 + $0x8] sm:$0xf]
      %v269 = vld [vmem:[%s232 + $0xc] sm:$0xf]
      %v270 = vld [vmem:[%s232 + $0x10] sm:$0xf]
      %v271 = vld [vmem:[%s232 + $0x14] sm:$0xf]
      %v272 = vld [vmem:[%s232 + $0x18] sm:$0xf]
      %v273 = vld [vmem:[%s232 + $0x1c] sm:$0xf]
      %v274 = vld [vmem:[%s238] sm:$0xf]
      %v275 = vld [vmem:[%s238 + $0x4] sm:$0xf]
      %v276 = vld [vmem:[%s238 + $0x8] sm:$0xf]
      %v277 = vld [vmem:[%s238 + $0xc] sm:$0xf]
      %v278 = vld [vmem:[%s238 + $0x10] sm:$0xf]
      %v279 = vld [vmem:[%s238 + $0x14] sm:$0xf]
      %v280 = vld [vmem:[%s238 + $0x18] sm:$0xf]
      %v281 = vld [vmem:[%s238 + $0x1c] sm:$0xf]
      %v282 = vld [vmem:[%s238 + $0x20] sm:$0xf]
      %v283 = vld [vmem:[%s238 + $0x24] sm:$0xf]
      %v284 = vld [vmem:[%s238 + $0x28] sm:$0xf]
      %v285 = vld [vmem:[%s238 + $0x2c] sm:$0xf]
      %v286 = vld [vmem:[%s238 + $0x30] sm:$0xf]
      %v287 = vld [vmem:[%s238 + $0x34] sm:$0xf]
      %v288 = vld [vmem:[%s238 + $0x38] sm:$0xf]
      %v289 = vld [vmem:[%s238 + $0x3c] sm:$0xf]
      %v298 = vunpack.c.l.b16 %v266
      %v299 = vunpack.c.l.b16 %v267
      %v300 = vunpack.c.l.b16 %v268
      %v301 = vunpack.c.l.b16 %v269
      %v302 = vunpack.c.l.b16 %v270
      %v303 = vunpack.c.l.b16 %v271
      %v304 = vunpack.c.l.b16 %v272
      %v305 = vunpack.c.l.b16 %v273
      %v306 = vpack.c.b16 %v299, %v298
      %v307 = vpack.c.b16 %v301, %v300
      %v308 = vpack.c.b16 %v303, %v302
      %v309 = vpack.c.b16 %v305, %v304
      %v330 = vunpack.c.l.b16 %v274
      %v331 = vunpack.c.l.b16 %v275
      %v332 = vunpack.c.l.b16 %v276
      %v333 = vunpack.c.l.b16 %v277
      %v334 = vunpack.c.l.b16 %v278
      %v335 = vunpack.c.l.b16 %v279
      %v336 = vunpack.c.l.b16 %v280
      %v337 = vunpack.c.l.b16 %v281
      %v338 = vunpack.c.l.b16 %v282
      %v339 = vunpack.c.l.b16 %v283
      %v340 = vunpack.c.l.b16 %v284
      %v341 = vunpack.c.l.b16 %v285
      %v342 = vunpack.c.l.b16 %v286
      %v343 = vunpack.c.l.b16 %v287
      %v344 = vunpack.c.l.b16 %v288
      %v345 = vunpack.c.l.b16 %v289
      %v346 = vpack.c.b16 %v331, %v330
      %v347 = vpack.c.b16 %v333, %v332
      %v348 = vpack.c.b16 %v335, %v334
      %v349 = vpack.c.b16 %v337, %v336
      %v350 = vpack.c.b16 %v339, %v338
      %v351 = vpack.c.b16 %v341, %v340
      %v352 = vpack.c.b16 %v343, %v342
      %v353 = vpack.c.b16 %v345, %v344
      %362 = vmatpush.bf16.msra.mxu0 %v353
      %363 = vmatpush.bf16.msra.mxu0 %v352
      %364 = vmatpush.bf16.msra.mxu0 %v351
      %365 = vmatpush.bf16.msra.mxu0 %v350
      %366 = vmatpush.bf16.msra.mxu0 %v349
      %367 = vmatpush.bf16.msra.mxu0 %v348
      %368 = vmatpush.bf16.msra.mxu0 %v347
      %369 = vmatpush.bf16.msra.mxu0 %v346
      %370 = vmatmul.bf16.gmra.mxu0 %v306
      %v371 = vpop.f32.mrf.mxu0
      %v372 = vadd.f32 0.0, %v371
      %v373 = vpop.f32.mrf.mxu0
      %v374 = vadd.f32 0.0, %v373
      %375 = vmatmul.bf16.gmra.mxu0 %v307
      %v376 = vpop.f32.mrf.mxu0
      %v377 = vadd.f32 0.0, %v376
      %v378 = vpop.f32.mrf.mxu0
      %v379 = vadd.f32 0.0, %v378
      %380 = vmatmul.bf16.gmra.mxu0 %v308
      %v381 = vpop.f32.mrf.mxu0
      %v382 = vadd.f32 0.0, %v381
      %v383 = vpop.f32.mrf.mxu0
      %v384 = vadd.f32 0.0, %v383
      %385 = vmatmul.bf16.gmra.mxu0 %v309
      %v386 = vpop.f32.mrf.mxu0
      %v387 = vadd.f32 0.0, %v386
      %v388 = vpop.f32.mrf.mxu0
      %v389 = vadd.f32 0.0, %v388
      %390 = vdwg.mxu0
      %v391 = vadd.f32 %v258, %v372
      %v392 = vadd.f32 %v259, %v374
      %v393 = vadd.f32 %v260, %v377
      %v394 = vadd.f32 %v261, %v379
      %v395 = vadd.f32 %v262, %v382
      %v396 = vadd.f32 %v263, %v384
      %v397 = vadd.f32 %v264, %v387
      %v398 = vadd.f32 %v265, %v389
      %399 = vst [vmem:[#allocation2] sm:$0xff] %v391
      %400 = vst [vmem:[#allocation2 + $0x8] sm:$0xff] %v392
      %401 = vst [vmem:[#allocation2 + $0x10] sm:$0xff] %v393
      %402 = vst [vmem:[#allocation2 + $0x18] sm:$0xff] %v394
      %403 = vst [vmem:[#allocation2 + $0x20] sm:$0xff] %v395
      %404 = vst [vmem:[#allocation2 + $0x28] sm:$0xff] %v396
      %405 = vst [vmem:[#allocation2 + $0x30] sm:$0xff] %v397
      %406 = vst [vmem:[#allocation2 + $0x38] sm:$0xff] %v398
      // Predicated region
      $region41: #{gcn_forward.5} parent=35 // pred_check
        %p407 = pneg %p246
      $region42: #{gcn_forward.5} parent=35 // pred_check_branch
        %409 = sbr.rel (%p407) target = $region44
      $region43: #{gcn_forward.5} parent=35 // pred_region
        %v410 = vld [vmem:[#allocation2] sm:$0xff]
        %v411 = vld [vmem:[#allocation2 + $0x8] sm:$0xff]
        %v412 = vld [vmem:[#allocation2 + $0x10] sm:$0xff]
        %v413 = vld [vmem:[#allocation2 + $0x18] sm:$0xff]
        %v414 = vld [vmem:[#allocation2 + $0x20] sm:$0xff]
        %v415 = vld [vmem:[#allocation2 + $0x28] sm:$0xff]
        %v416 = vld [vmem:[#allocation2 + $0x30] sm:$0xff]
        %v417 = vld [vmem:[#allocation2 + $0x38] sm:$0xff]
        %v418 = vpack.c.bf16 %v411, %v410
        %v419 = vpack.c.bf16 %v413, %v412
        %v420 = vpack.c.bf16 %v415, %v414
        %v421 = vpack.c.bf16 %v417, %v416
        %v422 = vld [vmem:[%s2] sm:$0xf]
        %v423 = vld [vmem:[%s2 + $0x4] sm:$0xf]
        %v424 = vld [vmem:[%s2 + $0x8] sm:$0xf]
        %v425 = vld [vmem:[%s2 + $0xc] sm:$0xf]
        %v426 = vld [vmem:[%s2 + $0x10] sm:$0xf]
        %v427 = vld [vmem:[%s2 + $0x14] sm:$0xf]
        %v428 = vld [vmem:[%s2 + $0x18] sm:$0xf]
        %v429 = vld [vmem:[%s2 + $0x1c] sm:$0xf]
        %v430 = vld [vmem:[%s2 + $0x20] sm:$0xf]
        %v431 = vld [vmem:[%s2 + $0x24] sm:$0xf]
        %v432 = vld [vmem:[%s2 + $0x28] sm:$0xf]
        %v433 = vld [vmem:[%s2 + $0x2c] sm:$0xf]
        %v434 = vld [vmem:[%s2 + $0x30] sm:$0xf]
        %v435 = vld [vmem:[%s2 + $0x34] sm:$0xf]
        %v436 = vld [vmem:[%s2 + $0x38] sm:$0xf]
        %v437 = vld [vmem:[%s2 + $0x3c] sm:$0xf]
        %v438 = vld [vmem:[%s3] sm:$0x1]
        %v440 = vperm.slane %v438, 0
        %v458 = vunpack.c.l.b16 %v422
        %v459 = vunpack.c.l.b16 %v423
        %v460 = vunpack.c.l.b16 %v424
        %v461 = vunpack.c.l.b16 %v425
        %v462 = vunpack.c.l.b16 %v426
        %v463 = vunpack.c.l.b16 %v427
        %v464 = vunpack.c.l.b16 %v428
        %v465 = vunpack.c.l.b16 %v429
        %v466 = vunpack.c.l.b16 %v430
        %v467 = vunpack.c.l.b16 %v431
        %v468 = vunpack.c.l.b16 %v432
        %v469 = vunpack.c.l.b16 %v433
        %v470 = vunpack.c.l.b16 %v434
        %v471 = vunpack.c.l.b16 %v435
        %v472 = vunpack.c.l.b16 %v436
        %v473 = vunpack.c.l.b16 %v437
        %v474 = vpack.c.b16 %v459, %v458
        %v475 = vpack.c.b16 %v461, %v460
        %v476 = vpack.c.b16 %v463, %v462
        %v477 = vpack.c.b16 %v465, %v464
        %v478 = vpack.c.b16 %v467, %v466
        %v479 = vpack.c.b16 %v469, %v468
        %v480 = vpack.c.b16 %v471, %v470
        %v481 = vpack.c.b16 %v473, %v472
        %490 = vmatpush.bf16.msra.mxu0 %v481
        %491 = vmatpush.bf16.msra.mxu0 %v480
        %492 = vmatpush.bf16.msra.mxu0 %v479
        %493 = vmatpush.bf16.msra.mxu0 %v478
        %494 = vmatpush.bf16.msra.mxu0 %v477
        %495 = vmatpush.bf16.msra.mxu0 %v476
        %496 = vmatpush.bf16.msra.mxu0 %v475
        %497 = vmatpush.bf16.msra.mxu0 %v474
        %498 = vmatmul.bf16.gmra.mxu0 %v418
        %v499 = vpop.f32.mrf.mxu0
        %v500 = vadd.f32 %v440, %v499
        %v501 = vpop.f32.mrf.mxu0
        %v502 = vadd.f32 %v440, %v501
        %503 = vmatmul.bf16.gmra.mxu0 %v419
        %v504 = vpop.f32.mrf.mxu0
        %v505 = vadd.f32 %v440, %v504
        %v506 = vpop.f32.mrf.mxu0
        %v507 = vadd.f32 %v440, %v506
        %508 = vmatmul.bf16.gmra.mxu0 %v420
        %v509 = vpop.f32.mrf.mxu0
        %v510 = vadd.f32 %v440, %v509
        %v511 = vpop.f32.mrf.mxu0
        %v512 = vadd.f32 %v440, %v511
        %513 = vmatmul.bf16.gmra.mxu0 %v421
        %v514 = vpop.f32.mrf.mxu0
        %v515 = vadd.f32 %v440, %v514
        %v516 = vpop.f32.mrf.mxu0
        %v517 = vadd.f32 %v440, %v516
        %518 = vdwg.mxu0
        %519 = vst [vmem:[%s244] sm:$0xff] %v500
        %520 = vst [vmem:[%s244 + $0x8] sm:$0xff] %v502
        %521 = vst [vmem:[%s244 + $0x10] sm:$0xff] %v505
        %522 = vst [vmem:[%s244 + $0x18] sm:$0xff] %v507
        %523 = vst [vmem:[%s244 + $0x20] sm:$0xff] %v510
        %524 = vst [vmem:[%s244 + $0x28] sm:$0xff] %v512
        %525 = vst [vmem:[%s244 + $0x30] sm:$0xff] %v515
        %526 = vst [vmem:[%s244 + $0x38] sm:$0xff] %v517
      $region44: #{gcn_forward.5} parent=35 // pred_fallthru
        _
      %s527 = smul.u32 8, %s19
      %p528 = scmp.lt.s32.totalorder %s527, 15
      %s529 = scalar_select %p528, %s527, 15
      %s530 = smul.addr %s529, 8
      %s531 = scalar_lea.vmem %s4, %s530
      // Predicated region
      $region45: #{gcn_forward.5} parent=35 // pred_check
        %p532 = pneg %p141
      $region46: #{gcn_forward.5} parent=35 // pred_check_branch
        %534 = sbr.rel (%p532) target = $region48
      $region47: #{gcn_forward.5} parent=35 // pred_region
        %s535 = smul.u32 8, %s19
      $region48: #{gcn_forward.5} parent=35 // pred_fallthru
        _
    $region36: #{gcn_forward.5} parent=5 // pred_fallthru
      _
    %p536 = scmp.le.s32.totalorder 2, %s10
    // Predicated region
    $region49: #{gcn_forward.5} parent=5 // pred_check
      %p537 = pneg %p536
    $region50: #{gcn_forward.5} parent=5 // pred_check_branch
      %539 = sbr.rel (%p537) target = $region52
    $region51: #{gcn_forward.5} parent=5 // pred_region
      %s540 = ssub.s32 %s10, 2
      // Predicated region
      $region53: #{gcn_forward.5} parent=51 // pred_check
        %p541 = pneg %p147
      $region54: #{gcn_forward.5} parent=51 // pred_check_branch
        %543 = sbr.rel (%p541) target = $region56
      $region55: #{gcn_forward.5} parent=51 // pred_region
        %s544 = smul.u32 8, %s21
        %p545 = scmp.lt.s32.totalorder %s544, 15
        %s546 = scalar_select %p545, %s544, 15
        %s547 = smul.addr %s546, 8
        %s548 = scalar_lea.vmem %s4, %s547
      $region56: #{gcn_forward.5} parent=51 // pred_fallthru
        _
    $region52: #{gcn_forward.5} parent=5 // pred_fallthru
      _
  $region6: #{gcn_forward.5} parent=0 // loop_footer
    %s14 = sadd.s32 1, %s10
  $region7: #{gcn_forward.5} parent=0 // loop_footer_branch
    %9 = sbr.rel target = $region3
  $region8: #{gcn_forward.5} parent=0 // loop_exit
    _

// kernel: gcn_forward.3
$region0: #{gcn_forward.3}
  #allocation0 [shape = 'u32[]', space=smem, size = 0x4, offset = 0x4, fixed_abs, tag = 'smem constant byte address 0x4 - core index']
  #allocation1 [shape = 'u32[72,128]{1,0:T(1,128)}', space=vmem, size = 0x9000, scoped, tag = 'internal scratch']
  #allocation2 [shape = 'f32[64,128]{1,0:T(8,128)}', space=vmem, size = 0x8000, scoped, tag = 'scratch operand']
  %s0 = inlined_call_operand.vmem [shape: bf16[128,128], index: 0, kind: input, shape index: {}]
  %s1 = inlined_call_operand.vmem [shape: bf16[128,128], index: 1, kind: input, shape index: {}]
  %s2 = inlined_call_operand.vmem [shape: bf16[128,128], index: 2, kind: input, shape index: {}]
  %s3 = inlined_call_operand.vmem [shape: f32[1,128], index: 3, kind: input, shape index: {}]
  %s4 = inlined_call_operand.vmem [shape: bf16[128,128], index: 4, kind: output, shape index: {}]
  %s5 = sld [smem:[#allocation0]]
  $region57: #{gcn_forward.3} parent=0
    _
  %s7 = ssub.s32 1, %s5
  %s8 = scalar_select 0, %s7, %s5
  loop: start=0, step=1, limit=4
  $region2: #{gcn_forward.3} parent=0 // loop_pre_header
    _
  $region3: #{gcn_forward.3} parent=0 // loop_header
    %s10 = sphi 0, %s14
    %p11 = scmp.ge.s32.totalorder %s10, 4
    %s17 = sphi 0, %s29
    %s18 = sphi 0, %s25
    %s19 = sphi 0, %s17
    %s20 = sphi 0, %s18
    %s21 = sphi 0, %s19
    %s22 = sphi 0, %s20
    %s34 = sphi 0, %s36
    %s37 = sphi 0, %s34
    %s38 = sphi 0, %s37
    %s54 = sphi 0, %s38
    %s60 = sphi 0, %s62
    %s63 = sphi 0, %s60
    %s64 = sphi 0, %s63
    %s80 = sphi 0, %s64
    %s84 = sphi 0, %s84
    %s86 = sphi 0, %s84
    %s87 = sphi 0, %s86
    %s101 = sphi 0, %s87
    %s105 = sphi 0, %s105
    %s107 = sphi 0, %s105
    %s108 = sphi 0, %s107
    %s122 = sphi 0, %s108
    %s128 = sphi 0, %s130
    %s131 = sphi 0, %s128
    %s132 = sphi 0, %s131
    %s148 = sphi 0, %s132
  $region4: #{gcn_forward.3} parent=0 // loop_header_branch
    %13 = sbr.rel (%p11) target = $region8
  $region5: #{gcn_forward.3} parent=0 // loop_body
    %s15 = ssub.s32 %s10, 1
    %s16 = ssub.s32 %s10, 2
    %s23 = sadd.s32 1, %s18
    %p24 = scmp.ge.s32.totalorder %s23, 1
    %s25 = scalar_select %p24, 0, %s23
    %s26 = sadd.s32 1, %s17
    %s27 = scalar_select %p24, %s26, %s17
    %p28 = scmp.ge.s32.totalorder %s27, 2
    %s29 = scalar_select %p28, 0, %s27
    %s30 = ssub.s32 %s17, %s29
    %s31 = ssub.s32 %s18, %s25
    %s32 = sor.u32 %s30, %s31
    %p33 = scmp.eq.s32.totalorder %s32, 0
    %s35 = sadd.s32 %s34, 1
    %s36 = scalar_select %p33, %s34, %s35
    %p39 = pneg %p33
    %p40 = scmp.eq.s32.totalorder %s10, 1
    %p41 = por %p39, %p40
    %p42 = scmp.ne.s32.totalorder %s34, %s37
    %p43 = scmp.eq.s32.totalorder %s10, 0
    %p44 = por %p42, %p43
    %p45 = scmp.ne.s32.totalorder %s34, %s37
    %p46 = scmp.eq.s32.totalorder %s15, 1
    %p47 = por %p45, %p46
    %p48 = scmp.ne.s32.totalorder %s37, %s38
    %p49 = scmp.eq.s32.totalorder %s15, 0
    %p50 = por %p48, %p49
    %p51 = scmp.ne.s32.totalorder %s37, %s38
    %p52 = scmp.eq.s32.totalorder %s16, 1
    %p53 = por %p51, %p52
    %p55 = scmp.ne.s32.totalorder %s38, %s54
    %p56 = scmp.eq.s32.totalorder %s16, 0
    %p57 = por %p55, %p56
    %s58 = ssub.s32 %s18, %s25
    %p59 = scmp.eq.s32.totalorder %s58, 0
    %s61 = sadd.s32 %s60, 1
    %s62 = scalar_select %p59, %s60, %s61
    %p65 = pneg %p59
    %p66 = scmp.eq.s32.totalorder %s10, 1
    %p67 = por %p65, %p66
    %p68 = scmp.ne.s32.totalorder %s60, %s63
    %p69 = scmp.eq.s32.totalorder %s10, 0
    %p70 = por %p68, %p69
    %p71 = scmp.ne.s32.totalorder %s60, %s63
    %p72 = scmp.eq.s32.totalorder %s15, 1
    %p73 = por %p71, %p72
    %p74 = scmp.ne.s32.totalorder %s63, %s64
    %p75 = scmp.eq.s32.totalorder %s15, 0
    %p76 = por %p74, %p75
    %p77 = scmp.ne.s32.totalorder %s63, %s64
    %p78 = scmp.eq.s32.totalorder %s16, 1
    %p79 = por %p77, %p78
    %p81 = scmp.ne.s32.totalorder %s64, %s80
    %p82 = scmp.eq.s32.totalorder %s16, 0
    %p83 = por %p81, %p82
    %s85 = sadd.s32 %s84, 1
    %p88 = scmp.eq.s32.totalorder %s10, 1
    %p89 = scmp.ne.s32.totalorder %s84, %s86
    %p90 = scmp.eq.s32.totalorder %s10, 0
    %p91 = por %p89, %p90
    %p92 = scmp.ne.s32.totalorder %s84, %s86
    %p93 = scmp.eq.s32.totalorder %s15, 1
    %p94 = por %p92, %p93
    %p95 = scmp.ne.s32.totalorder %s86, %s87
    %p96 = scmp.eq.s32.totalorder %s15, 0
    %p97 = por %p95, %p96
    %p98 = scmp.ne.s32.totalorder %s86, %s87
    %p99 = scmp.eq.s32.totalorder %s16, 1
    %p100 = por %p98, %p99
    %p102 = scmp.ne.s32.totalorder %s87, %s101
    %p103 = scmp.eq.s32.totalorder %s16, 0
    %p104 = por %p102, %p103
    %s106 = sadd.s32 %s105, 1
    %p109 = scmp.eq.s32.totalorder %s10, 1
    %p110 = scmp.ne.s32.totalorder %s105, %s107
    %p111 = scmp.eq.s32.totalorder %s10, 0
    %p112 = por %p110, %p111
    %p113 = scmp.ne.s32.totalorder %s105, %s107
    %p114 = scmp.eq.s32.totalorder %s15, 1
    %p115 = por %p113, %p114
    %p116 = scmp.ne.s32.totalorder %s107, %s108
    %p117 = scmp.eq.s32.totalorder %s15, 0
    %p118 = por %p116, %p117
    %p119 = scmp.ne.s32.totalorder %s107, %s108
    %p120 = scmp.eq.s32.totalorder %s16, 1
    %p121 = por %p119, %p120
    %p123 = scmp.ne.s32.totalorder %s108, %s122
    %p124 = scmp.eq.s32.totalorder %s16, 0
    %p125 = por %p123, %p124
    %s126 = ssub.s32 %s17, %s29
    %p127 = scmp.eq.s32.totalorder %s126, 0
    %s129 = sadd.s32 %s128, 1
    %s130 = scalar_select %p127, %s128, %s129
    %p133 = pneg %p127
    %p134 = scmp.eq.s32.totalorder %s10, 1
    %p135 = por %p133, %p134
    %p136 = scmp.ne.s32.totalorder %s128, %s131
    %p137 = scmp.eq.s32.totalorder %s10, 0
    %p138 = por %p136, %p137
    %p139 = scmp.ne.s32.totalorder %s128, %s131
    %p140 = scmp.eq.s32.totalorder %s15, 1
    %p141 = por %p139, %p140
    %p142 = scmp.ne.s32.totalorder %s131, %s132
    %p143 = scmp.eq.s32.totalorder %s15, 0
    %p144 = por %p142, %p143
    %p145 = scmp.ne.s32.totalorder %s131, %s132
    %p146 = scmp.eq.s32.totalorder %s16, 1
    %p147 = por %p145, %p146
    %p149 = scmp.ne.s32.totalorder %s132, %s148
    %p150 = scmp.eq.s32.totalorder %s16, 0
    %p151 = por %p149, %p150
    %p152 = scmp.le.s32.totalorder 1, %s10
    %p153 = scmp.lt.s32.totalorder %s10, 3
    %p154 = pnand %p152, %p153
    %p155 = pneg %p154
    // Predicated region
    $region9: #{gcn_forward.3} parent=5 // pred_check
      _
    $region10: #{gcn_forward.3} parent=5 // pred_check_branch
      %157 = sbr.rel (%p154) target = $region12
    $region11: #{gcn_forward.3} parent=5 // pred_region
      %s158 = ssub.s32 %s10, 1
      // Predicated region
      $region13: #{gcn_forward.3} parent=11 // pred_check
        %p159 = pneg %p76
      $region14: #{gcn_forward.3} parent=11 // pred_check_branch
        %161 = sbr.rel (%p159) target = $region16
      $region15: #{gcn_forward.3} parent=11 // pred_region
        %s162 = smul.u32 16, %s20
        %p163 = scmp.lt.s32.totalorder %s162, 15
        %s164 = scalar_select %p163, %s162, 15
        %s165 = smul.addr %s164, 4
        %s166 = scalar_lea.vmem %s1, %s165
        %s167 = smul.u32 16, %s20
      $region16: #{gcn_forward.3} parent=11 // pred_fallthru
        _
      // Predicated region
      $region17: #{gcn_forward.3} parent=11 // pred_check
        %p168 = pneg %p97
      $region18: #{gcn_forward.3} parent=11 // pred_check_branch
        %170 = sbr.rel (%p168) target = $region20
      $region19: #{gcn_forward.3} parent=11 // pred_region
        _
      $region20: #{gcn_forward.3} parent=11 // pred_fallthru
        _
      // Predicated region
      $region21: #{gcn_forward.3} parent=11 // pred_check
        %p171 = pneg %p118
      $region22: #{gcn_forward.3} parent=11 // pred_check_branch
        %173 = sbr.rel (%p171) target = $region24
      $region23: #{gcn_forward.3} parent=11 // pred_region
        _
      $region24: #{gcn_forward.3} parent=11 // pred_fallthru
        _
    $region12: #{gcn_forward.3} parent=5 // pred_fallthru
      _
    %p174 = scmp.lt.s32.totalorder %s10, 2
    // Predicated region
    $region25: #{gcn_forward.3} parent=5 // pred_check
      %p175 = pneg %p174
    $region26: #{gcn_forward.3} parent=5 // pred_check_branch
      %177 = sbr.rel (%p175) target = $region28
    $region27: #{gcn_forward.3} parent=5 // pred_region
      // Predicated region
      $region29: #{gcn_forward.3} parent=27 // pred_check
        %p178 = pneg %p44
      $region30: #{gcn_forward.3} parent=27 // pred_check_branch
        %180 = sbr.rel (%p178) target = $region32
      $region31: #{gcn_forward.3} parent=27 // pred_region
        %s181 = smul.u32 8, %s17
        %p182 = scmp.lt.s32.totalorder %s181, 15
        %s183 = scalar_select %p182, %s181, 15
        %p184 = scmp.lt.s32.totalorder %s18, 0
        %s185 = scalar_select %p184, %s18, 0
        %s186 = sadd.s32 %s185, %s183
        %s187 = smul.addr %s186, 4
        %s188 = scalar_lea.vmem %s0, %s187
        %s189 = smul.u32 8, %s17
      $region32: #{gcn_forward.3} parent=27 // pred_fallthru
        _
    $region28: #{gcn_forward.3} parent=5 // pred_fallthru
      _
    %p190 = scmp.le.s32.totalorder 1, %s10
    %p191 = scmp.lt.s32.totalorder %s10, 3
    %p192 = pnand %p190, %p191
    %p193 = pneg %p192
    // Predicated region
    $region33: #{gcn_forward.3} parent=5 // pred_check
      _
    $region34: #{gcn_forward.3} parent=5 // pred_check_branch
      %195 = sbr.rel (%p192) target = $region36
    $region35: #{gcn_forward.3} parent=5 // pred_region
      %s196 = ssub.s32 %s10, 1
      %s197 = smul.u32 8, %s19
      %p198 = scmp.lt.s32.totalorder %s197, 15
      %s199 = scalar_select %p198, %s197, 15
      %p200 = scmp.lt.s32.totalorder %s20, 0
      %s201 = scalar_select %p200, %s20, 0
      %s202 = sadd.s32 %s201, %s199
      %s203 = smul.addr %s202, 4
      %s204 = scalar_lea.vmem %s0, %s203
      %p205 = pneg %p50
      %p206 = pneg %p47
      %s207 = smul.u32 16, %s20
      %p208 = scmp.lt.s32.totalorder %s207, 15
      %s209 = scalar_select %p208, %s207, 15
      %s210 = smul.addr %s209, 4
      %s211 = scalar_lea.vmem %s1, %s210
      %p212 = pneg %p76
      %p213 = pneg %p73
      %p214 = pneg %p97
      %p215 = pneg %p94
      %p216 = pneg %p118
      %p217 = pneg %p115
      %p218 = pneg %p144
      %p219 = pneg %p141
      %s220 = smul.u32 8, %s19
      %p221 = scmp.lt.s32.totalorder %s220, 15
      %s222 = scalar_select %p221, %s220, 15
      %s223 = smul.addr %s222, 4
      %s224 = scalar_lea.vmem %s4, %s223
      %s225 = smul.u32 8, %s19
      %p226 = scmp.lt.s32.totalorder %s225, 15
      %s227 = scalar_select %p226, %s225, 15
      %p228 = scmp.lt.s32.totalorder %s20, 0
      %s229 = scalar_select %p228, %s20, 0
      %s230 = sadd.s32 %s229, %s227
      %s231 = smul.addr %s230, 4
      %s232 = scalar_lea.vmem %s0, %s231
      %s233 = smul.u32 8, %s19
      %s234 = smul.u32 16, %s20
      %p235 = scmp.lt.s32.totalorder %s234, 15
      %s236 = scalar_select %p235, %s234, 15
      %s237 = smul.addr %s236, 4
      %s238 = scalar_lea.vmem %s1, %s237
      %s239 = smul.u32 16, %s20
      %s240 = smul.u32 8, %s19
      %p241 = scmp.lt.s32.totalorder %s240, 15
      %s242 = scalar_select %p241, %s240, 15
      %s243 = smul.addr %s242, 4
      %s244 = scalar_lea.vmem %s4, %s243
      %s245 = smul.u32 8, %s19
      %p246 = scmp.eq.s32.totalorder %s20, 0
      // Predicated region
      $region37: #{gcn_forward.3} parent=35 // pred_check
        %p247 = pneg %p246
      $region38: #{gcn_forward.3} parent=35 // pred_check_branch
        %249 = sbr.rel (%p247) target = $region40
      $region39: #{gcn_forward.3} parent=35 // pred_region
        %250 = vst [vmem:[#allocation2] sm:$0xff] 0.0
        %251 = vst [vmem:[#allocation2 + $0x8] sm:$0xff] 0.0
        %252 = vst [vmem:[#allocation2 + $0x10] sm:$0xff] 0.0
        %253 = vst [vmem:[#allocation2 + $0x18] sm:$0xff] 0.0
        %254 = vst [vmem:[#allocation2 + $0x20] sm:$0xff] 0.0
        %255 = vst [vmem:[#allocation2 + $0x28] sm:$0xff] 0.0
        %256 = vst [vmem:[#allocation2 + $0x30] sm:$0xff] 0.0
        %257 = vst [vmem:[#allocation2 + $0x38] sm:$0xff] 0.0
      $region40: #{gcn_forward.3} parent=35 // pred_fallthru
        _
      %v258 = vld [vmem:[#allocation2] sm:$0xff]
      %v259 = vld [vmem:[#allocation2 + $0x8] sm:$0xff]
      %v260 = vld [vmem:[#allocation2 + $0x10] sm:$0xff]
      %v261 = vld [vmem:[#allocation2 + $0x18] sm:$0xff]
      %v262 = vld [vmem:[#allocation2 + $0x20] sm:$0xff]
      %v263 = vld [vmem:[#allocation2 + $0x28] sm:$0xff]
      %v264 = vld [vmem:[#allocation2 + $0x30] sm:$0xff]
      %v265 = vld [vmem:[#allocation2 + $0x38] sm:$0xff]
      %v266 = vld [vmem:[%s232] sm:$0xf]
      %v267 = vld [vmem:[%s232 + $0x4] sm:$0xf]
      %v268 = vld [vmem:[%s232 + $0x8] sm:$0xf]
      %v269 = vld [vmem:[%s232 + $0xc] sm:$0xf]
      %v270 = vld [vmem:[%s232 + $0x10] sm:$0xf]
      %v271 = vld [vmem:[%s232 + $0x14] sm:$0xf]
      %v272 = vld [vmem:[%s232 + $0x18] sm:$0xf]
      %v273 = vld [vmem:[%s232 + $0x1c] sm:$0xf]
      %v274 = vld [vmem:[%s238] sm:$0xf]
      %v275 = vld [vmem:[%s238 + $0x4] sm:$0xf]
      %v276 = vld [vmem:[%s238 + $0x8] sm:$0xf]
      %v277 = vld [vmem:[%s238 + $0xc] sm:$0xf]
      %v278 = vld [vmem:[%s238 + $0x10] sm:$0xf]
      %v279 = vld [vmem:[%s238 + $0x14] sm:$0xf]
      %v280 = vld [vmem:[%s238 + $0x18] sm:$0xf]
      %v281 = vld [vmem:[%s238 + $0x1c] sm:$0xf]
      %v282 = vld [vmem:[%s238 + $0x20] sm:$0xf]
      %v283 = vld [vmem:[%s238 + $0x24] sm:$0xf]
      %v284 = vld [vmem:[%s238 + $0x28] sm:$0xf]
      %v285 = vld [vmem:[%s238 + $0x2c] sm:$0xf]
      %v286 = vld [vmem:[%s238 + $0x30] sm:$0xf]
      %v287 = vld [vmem:[%s238 + $0x34] sm:$0xf]
      %v288 = vld [vmem:[%s238 + $0x38] sm:$0xf]
      %v289 = vld [vmem:[%s238 + $0x3c] sm:$0xf]
      %v298 = vunpack.c.l.b16 %v266
      %v299 = vunpack.c.l.b16 %v267
      %v300 = vunpack.c.l.b16 %v268
      %v301 = vunpack.c.l.b16 %v269
      %v302 = vunpack.c.l.b16 %v270
      %v303 = vunpack.c.l.b16 %v271
      %v304 = vunpack.c.l.b16 %v272
      %v305 = vunpack.c.l.b16 %v273
      %v306 = vpack.c.b16 %v299, %v298
      %v307 = vpack.c.b16 %v301, %v300
      %v308 = vpack.c.b16 %v303, %v302
      %v309 = vpack.c.b16 %v305, %v304
      %v330 = vunpack.c.l.b16 %v274
      %v331 = vunpack.c.l.b16 %v275
      %v332 = vunpack.c.l.b16 %v276
      %v333 = vunpack.c.l.b16 %v277
      %v334 = vunpack.c.l.b16 %v278
      %v335 = vunpack.c.l.b16 %v279
      %v336 = vunpack.c.l.b16 %v280
      %v337 = vunpack.c.l.b16 %v281
      %v338 = vunpack.c.l.b16 %v282
      %v339 = vunpack.c.l.b16 %v283
      %v340 = vunpack.c.l.b16 %v284
      %v341 = vunpack.c.l.b16 %v285
      %v342 = vunpack.c.l.b16 %v286
      %v343 = vunpack.c.l.b16 %v287
      %v344 = vunpack.c.l.b16 %v288
      %v345 = vunpack.c.l.b16 %v289
      %v346 = vpack.c.b16 %v331, %v330
      %v347 = vpack.c.b16 %v333, %v332
      %v348 = vpack.c.b16 %v335, %v334
      %v349 = vpack.c.b16 %v337, %v336
      %v350 = vpack.c.b16 %v339, %v338
      %v351 = vpack.c.b16 %v341, %v340
      %v352 = vpack.c.b16 %v343, %v342
      %v353 = vpack.c.b16 %v345, %v344
      %362 = vmatpush.bf16.msra.mxu0 %v353
      %363 = vmatpush.bf16.msra.mxu0 %v352
      %364 = vmatpush.bf16.msra.mxu0 %v351
      %365 = vmatpush.bf16.msra.mxu0 %v350
      %366 = vmatpush.bf16.msra.mxu0 %v349
      %367 = vmatpush.bf16.msra.mxu0 %v348
      %368 = vmatpush.bf16.msra.mxu0 %v347
      %369 = vmatpush.bf16.msra.mxu0 %v346
      %370 = vmatmul.bf16.gmra.mxu0 %v306
      %v371 = vpop.f32.mrf.mxu0
      %v372 = vadd.f32 0.0, %v371
      %v373 = vpop.f32.mrf.mxu0
      %v374 = vadd.f32 0.0, %v373
      %375 = vmatmul.bf16.gmra.mxu0 %v307
      %v376 = vpop.f32.mrf.mxu0
      %v377 = vadd.f32 0.0, %v376
      %v378 = vpop.f32.mrf.mxu0
      %v379 = vadd.f32 0.0, %v378
      %380 = vmatmul.bf16.gmra.mxu0 %v308
      %v381 = vpop.f32.mrf.mxu0
      %v382 = vadd.f32 0.0, %v381
      %v383 = vpop.f32.mrf.mxu0
      %v384 = vadd.f32 0.0, %v383
      %385 = vmatmul.bf16.gmra.mxu0 %v309
      %v386 = vpop.f32.mrf.mxu0
      %v387 = vadd.f32 0.0, %v386
      %v388 = vpop.f32.mrf.mxu0
      %v389 = vadd.f32 0.0, %v388
      %390 = vdwg.mxu0
      %v391 = vadd.f32 %v258, %v372
      %v392 = vadd.f32 %v259, %v374
      %v393 = vadd.f32 %v260, %v377
      %v394 = vadd.f32 %v261, %v379
      %v395 = vadd.f32 %v262, %v382
      %v396 = vadd.f32 %v263, %v384
      %v397 = vadd.f32 %v264, %v387
      %v398 = vadd.f32 %v265, %v389
      %399 = vst [vmem:[#allocation2] sm:$0xff] %v391
      %400 = vst [vmem:[#allocation2 + $0x8] sm:$0xff] %v392
      %401 = vst [vmem:[#allocation2 + $0x10] sm:$0xff] %v393
      %402 = vst [vmem:[#allocation2 + $0x18] sm:$0xff] %v394
      %403 = vst [vmem:[#allocation2 + $0x20] sm:$0xff] %v395
      %404 = vst [vmem:[#allocation2 + $0x28] sm:$0xff] %v396
      %405 = vst [vmem:[#allocation2 + $0x30] sm:$0xff] %v397
      %406 = vst [vmem:[#allocation2 + $0x38] sm:$0xff] %v398
      // Predicated region
      $region41: #{gcn_forward.3} parent=35 // pred_check
        %p407 = pneg %p246
      $region42: #{gcn_forward.3} parent=35 // pred_check_branch
        %409 = sbr.rel (%p407) target = $region44
      $region43: #{gcn_forward.3} parent=35 // pred_region
        %v410 = vld [vmem:[#allocation2] sm:$0xff]
        %v411 = vld [vmem:[#allocation2 + $0x8] sm:$0xff]
        %v412 = vld [vmem:[#allocation2 + $0x10] sm:$0xff]
        %v413 = vld [vmem:[#allocation2 + $0x18] sm:$0xff]
        %v414 = vld [vmem:[#allocation2 + $0x20] sm:$0xff]
        %v415 = vld [vmem:[#allocation2 + $0x28] sm:$0xff]
        %v416 = vld [vmem:[#allocation2 + $0x30] sm:$0xff]
        %v417 = vld [vmem:[#allocation2 + $0x38] sm:$0xff]
        %v418 = vpack.c.bf16 %v411, %v410
        %v419 = vpack.c.bf16 %v413, %v412
        %v420 = vpack.c.bf16 %v415, %v414
        %v421 = vpack.c.bf16 %v417, %v416
        %v422 = vld [vmem:[%s2] sm:$0xf]
        %v423 = vld [vmem:[%s2 + $0x4] sm:$0xf]
        %v424 = vld [vmem:[%s2 + $0x8] sm:$0xf]
        %v425 = vld [vmem:[%s2 + $0xc] sm:$0xf]
        %v426 = vld [vmem:[%s2 + $0x10] sm:$0xf]
        %v427 = vld [vmem:[%s2 + $0x14] sm:$0xf]
        %v428 = vld [vmem:[%s2 + $0x18] sm:$0xf]
        %v429 = vld [vmem:[%s2 + $0x1c] sm:$0xf]
        %v430 = vld [vmem:[%s2 + $0x20] sm:$0xf]
        %v431 = vld [vmem:[%s2 + $0x24] sm:$0xf]
        %v432 = vld [vmem:[%s2 + $0x28] sm:$0xf]
        %v433 = vld [vmem:[%s2 + $0x2c] sm:$0xf]
        %v434 = vld [vmem:[%s2 + $0x30] sm:$0xf]
        %v435 = vld [vmem:[%s2 + $0x34] sm:$0xf]
        %v436 = vld [vmem:[%s2 + $0x38] sm:$0xf]
        %v437 = vld [vmem:[%s2 + $0x3c] sm:$0xf]
        %v438 = vld [vmem:[%s3] sm:$0x1]
        %v440 = vperm.slane %v438, 0
        %v458 = vunpack.c.l.b16 %v422
        %v459 = vunpack.c.l.b16 %v423
        %v460 = vunpack.c.l.b16 %v424
        %v461 = vunpack.c.l.b16 %v425
        %v462 = vunpack.c.l.b16 %v426
        %v463 = vunpack.c.l.b16 %v427
        %v464 = vunpack.c.l.b16 %v428
        %v465 = vunpack.c.l.b16 %v429
        %v466 = vunpack.c.l.b16 %v430
        %v467 = vunpack.c.l.b16 %v431
        %v468 = vunpack.c.l.b16 %v432
        %v469 = vunpack.c.l.b16 %v433
        %v470 = vunpack.c.l.b16 %v434
        %v471 = vunpack.c.l.b16 %v435
        %v472 = vunpack.c.l.b16 %v436
        %v473 = vunpack.c.l.b16 %v437
        %v474 = vpack.c.b16 %v459, %v458
        %v475 = vpack.c.b16 %v461, %v460
        %v476 = vpack.c.b16 %v463, %v462
        %v477 = vpack.c.b16 %v465, %v464
        %v478 = vpack.c.b16 %v467, %v466
        %v479 = vpack.c.b16 %v469, %v468
        %v480 = vpack.c.b16 %v471, %v470
        %v481 = vpack.c.b16 %v473, %v472
        %490 = vmatpush.bf16.msra.mxu0 %v481
        %491 = vmatpush.bf16.msra.mxu0 %v480
        %492 = vmatpush.bf16.msra.mxu0 %v479
        %493 = vmatpush.bf16.msra.mxu0 %v478
        %494 = vmatpush.bf16.msra.mxu0 %v477
        %495 = vmatpush.bf16.msra.mxu0 %v476
        %496 = vmatpush.bf16.msra.mxu0 %v475
        %497 = vmatpush.bf16.msra.mxu0 %v474
        %498 = vmatmul.bf16.gmra.mxu0 %v418
        %v499 = vpop.f32.mrf.mxu0
        %v500 = vadd.f32 %v440, %v499
        %v501 = vpop.f32.mrf.mxu0
        %v502 = vadd.f32 %v440, %v501
        %503 = vmatmul.bf16.gmra.mxu0 %v419
        %v504 = vpop.f32.mrf.mxu0
        %v505 = vadd.f32 %v440, %v504
        %v506 = vpop.f32.mrf.mxu0
        %v507 = vadd.f32 %v440, %v506
        %508 = vmatmul.bf16.gmra.mxu0 %v420
        %v509 = vpop.f32.mrf.mxu0
        %v510 = vadd.f32 %v440, %v509
        %v511 = vpop.f32.mrf.mxu0
        %v512 = vadd.f32 %v440, %v511
        %513 = vmatmul.bf16.gmra.mxu0 %v421
        %v514 = vpop.f32.mrf.mxu0
        %v515 = vadd.f32 %v440, %v514
        %v516 = vpop.f32.mrf.mxu0
        %v517 = vadd.f32 %v440, %v516
        %518 = vdwg.mxu0
        %v519 = vmax.f32 %v500, 0.0
        %v520 = vmax.f32 %v502, 0.0
        %v521 = vmax.f32 %v505, 0.0
        %v522 = vmax.f32 %v507, 0.0
        %v523 = vmax.f32 %v510, 0.0
        %v524 = vmax.f32 %v512, 0.0
        %v525 = vmax.f32 %v515, 0.0
        %v526 = vmax.f32 %v517, 0.0
        %v527 = vpack.c.bf16 %v519, %v519
        %v528 = vpack.c.bf16 %v520, %v520
        %v529 = vpack.c.bf16 %v521, %v521
        %v530 = vpack.c.bf16 %v522, %v522
        %v531 = vpack.c.bf16 %v523, %v523
        %v532 = vpack.c.bf16 %v524, %v524
        %v533 = vpack.c.bf16 %v525, %v525
        %v534 = vpack.c.bf16 %v526, %v526
        %535 = vst [vmem:[%s244] sm:$0xf] %v527
        %536 = vst [vmem:[%s244 + $0x4] sm:$0xf] %v528
        %537 = vst [vmem:[%s244 + $0x8] sm:$0xf] %v529
        %538 = vst [vmem:[%s244 + $0xc] sm:$0xf] %v530
        %539 = vst [vmem:[%s244 + $0x10] sm:$0xf] %v531
        %540 = vst [vmem:[%s244 + $0x14] sm:$0xf] %v532
        %541 = vst [vmem:[%s244 + $0x18] sm:$0xf] %v533
        %542 = vst [vmem:[%s244 + $0x1c] sm:$0xf] %v534
      $region44: #{gcn_forward.3} parent=35 // pred_fallthru
        _
      %s543 = smul.u32 8, %s19
      %p544 = scmp.lt.s32.totalorder %s543, 15
      %s545 = scalar_select %p544, %s543, 15
      %s546 = smul.addr %s545, 4
      %s547 = scalar_lea.vmem %s4, %s546
      // Predicated region
      $region45: #{gcn_forward.3} parent=35 // pred_check
        %p548 = pneg %p141
      $region46: #{gcn_forward.3} parent=35 // pred_check_branch
        %550 = sbr.rel (%p548) target = $region48
      $region47: #{gcn_forward.3} parent=35 // pred_region
        %s551 = smul.u32 8, %s19
      $region48: #{gcn_forward.3} parent=35 // pred_fallthru
        _
    $region36: #{gcn_forward.3} parent=5 // pred_fallthru
      _
    %p552 = scmp.le.s32.totalorder 2, %s10
    // Predicated region
    $region49: #{gcn_forward.3} parent=5 // pred_check
      %p553 = pneg %p552
    $region50: #{gcn_forward.3} parent=5 // pred_check_branch
      %555 = sbr.rel (%p553) target = $region52
    $region51: #{gcn_forward.3} parent=5 // pred_region
      %s556 = ssub.s32 %s10, 2
      // Predicated region
      $region53: #{gcn_forward.3} parent=51 // pred_check
        %p557 = pneg %p147
      $region54: #{gcn_forward.3} parent=51 // pred_check_branch
        %559 = sbr.rel (%p557) target = $region56
      $region55: #{gcn_forward.3} parent=51 // pred_region
        %s560 = smul.u32 8, %s21
        %p561 = scmp.lt.s32.totalorder %s560, 15
        %s562 = scalar_select %p561, %s560, 15
        %s563 = smul.addr %s562, 4
        %s564 = scalar_lea.vmem %s4, %s563
      $region56: #{gcn_forward.3} parent=51 // pred_fallthru
        _
    $region52: #{gcn_forward.3} parent=5 // pred_fallthru
      _
  $region6: #{gcn_forward.3} parent=0 // loop_footer
    %s14 = sadd.s32 1, %s10
  $region7: #{gcn_forward.3} parent=0 // loop_footer_branch
    %9 = sbr.rel target = $region3
  $region8: #{gcn_forward.3} parent=0 // loop_exit
    _

</llo_original>
